<compile_context>
chip_gen: v7x
topology: tpu7x:2x2x1
jax: 0.10.0
libtpu: 0.0.40
codegen_flags: <defaults>
</compile_context>

<pallas_src>
import math
import functools

import jax
import jax.numpy as jnp
from jax import lax
from jax.experimental import pallas as pl
from jax.experimental.pallas import tpu as pltpu


MASK_VALUE = -1e30  # large finite negative: avoids exp(-inf - -inf) = NaN


def _pick_block(dim, target, align):
    """Largest block <= target that divides `dim` and is a multiple of `align`.
    Falls back to the full dim (always legal under the TPU (8,128) block rule)."""
    if dim <= target:
        return dim
    for cand in range(target, 0, -align):
        if dim % cand == 0:
            return cand
    return dim


# -----------------------------------------------------------------------------
# Tiled matmul kernel (bias-free Linear); weight pre-transposed to (K, N) bf16
# -----------------------------------------------------------------------------
def _matmul_kernel(x_ref, w_ref, o_ref, acc_ref):
    @pl.when(pl.program_id(2) == 0)
    def _init():
        acc_ref[...] = jnp.zeros(acc_ref.shape, acc_ref.dtype)

    # bf16 MXU inputs, f32 accumulation.  Weight block is already (tk, tn), so
    # this is a clean standard contraction (no per-step weight-tile transpose).
    acc_ref[...] += jnp.dot(
        x_ref[...].astype(jnp.bfloat16),
        w_ref[...].astype(jnp.bfloat16),
        preferred_element_type=jnp.float32,
    )

    @pl.when(pl.program_id(2) == pl.num_programs(2) - 1)
    def _fin():
        o_ref[...] = acc_ref[...].astype(o_ref.dtype)


def linear(x2d, w_in_out, *, tm=512, tn=512, tk=1024):
    """x2d: (M, K); w_in_out: (K, N) pre-transposed (bf16) weight -> (M, N).
    NOTE: on v7x (64 MiB VMEM) prefer roughly half these tile sizes."""
    M, K = x2d.shape
    K2, N = w_in_out.shape
    assert K == K2
    tm = _pick_block(M, tm, 8)
    tn = _pick_block(N, tn, 128)
    tk = _pick_block(K, tk, 128)
    grid = (M // tm, N // tn, K // tk)
    cost = pl.CostEstimate(
        flops=2 * M * N * K,
        transcendentals=0,
        bytes_accessed=(M * K * x2d.dtype.itemsize
                        + N * K * w_in_out.dtype.itemsize
                        + M * N * x2d.dtype.itemsize),
    )
    return pl.pallas_call(
        _matmul_kernel,
        out_shape=jax.ShapeDtypeStruct((M, N), x2d.dtype),
        grid=grid,
        in_specs=[
            pl.BlockSpec((tm, tk), lambda i, j, k: (i, k)),
            pl.BlockSpec((tk, tn), lambda i, j, k: (k, j)),   # (K, N) layout
        ],
        out_specs=pl.BlockSpec((tm, tn), lambda i, j, k: (i, j)),
        scratch_shapes=[pltpu.VMEM((tm, tn), jnp.float32)],
        compiler_params=pltpu.CompilerParams(
            dimension_semantics=("parallel", "parallel", "arbitrary")),
        cost_estimate=cost,
    )(x2d, w_in_out)


# -----------------------------------------------------------------------------
# Flash (online-softmax) attention kernel, GQA-aware, causal mask in-kernel,
# fully-masked KV tiles skipped.
# -----------------------------------------------------------------------------
def _flash_attn_kernel(q_ref, k_ref, v_ref, o_ref,
                       q_sc, m_sc, l_sc, acc_sc, *,
                       n_rep, sm_scale, start_pos, s_block, t_block):
    si = pl.program_id(1)   # query tile
    ti = pl.program_id(2)   # KV tile ("arbitrary" reduction axis)

    n_kv = k_ref.shape[1]
    dh = q_ref.shape[3]
    rows = n_rep * s_block  # query heads sharing a KV head folded into the M dim

    @pl.when(ti == 0)
    def _init():
        m_sc[...] = jnp.full(m_sc.shape, MASK_VALUE, m_sc.dtype)
        l_sc[...] = jnp.zeros(l_sc.shape, l_sc.dtype)
        acc_sc[...] = jnp.zeros(acc_sc.shape, acc_sc.dtype)
        # Fold the softmax scale into q once per query tile and stage the bf16
        # result in VMEM; reused unchanged for every KV tile.
        q = q_ref[0].astype(jnp.float32) * sm_scale          # (H, Sk, Dh)
        q_sc[...] = q.reshape(n_kv, rows, dh).astype(jnp.bfloat16)

    # Skip KV tiles that lie entirely above the causal diagonal (roughly half
    # of all tiles during prefill).  Tile ti=0 is never fully masked, so m/l
    # always get real statistics before any skipped tile.
    @pl.when(ti * t_block <= si * s_block + (s_block - 1) + start_pos)
    def _compute():
        k = k_ref[0].astype(jnp.bfloat16)   # (Hkv, Tk, Dh) -- fetched once, never repeated
        v = v_ref[0].astype(jnp.bfloat16)

        s = jnp.einsum("gsd,gtd->gst", q_sc[...], k,
                       preferred_element_type=jnp.float32)    # (Hkv, rows, Tk)

        # Causal mask from broadcast-shaped iotas (no full (rows, Tk) int grids).
        q_pos = (lax.broadcasted_iota(jnp.int32, (1, rows, 1), 1) % s_block
                 + si * s_block + start_pos)                   # (1, rows, 1)
        k_pos = lax.broadcasted_iota(jnp.int32, (1, 1, t_block), 2) + ti * t_block
        s = jnp.where(q_pos >= k_pos, s, MASK_VALUE)

        # Online softmax; statistics kept lane-dense in f32.
        m_prev = m_sc[...]                                     # (Hkv, rows)
        m_new = jnp.maximum(m_prev, jnp.max(s, axis=-1))
        alpha = jnp.exp(m_prev - m_new)
        p = jnp.exp(s - m_new[..., None])
        l_sc[...] = alpha * l_sc[...] + jnp.sum(p, axis=-1)
        acc_sc[...] = alpha[..., None] * acc_sc[...] + jnp.einsum(
            "gst,gtd->gsd", p.astype(jnp.bfloat16), v,
            preferred_element_type=jnp.float32)
        m_sc[...] = m_new

    @pl.when(ti == pl.num_programs(2) - 1)
    def _fin():
        inv_l = pl.reciprocal(l_sc[...], approx=True)          # EUP slot
        out = acc_sc[...] * inv_l[..., None]                   # (Hkv, rows, Dh)
        # Re-interleave heads (h = g*n_rep + r) into a lane-dense (Sk, H*Dh)
        # slab with one transpose + one wide unmasked store.
        out = out.reshape(n_kv, n_rep, s_block, dh)
        out = jnp.transpose(out, (2, 0, 1, 3))                 # (Sk, Hkv, n_rep, Dh)
        o_ref[0] = out.reshape(s_block, n_kv * n_rep * dh).astype(o_ref.dtype)


def flash_attention(q, k, v, *, start_pos, s_block=256, t_block=256):
    """q: (B, H, S, Dh); k, v: (B, Hkv, T, Dh).  Returns lane-dense (B, S, H*Dh)."""
    B, H, S, Dh = q.shape
    _, Hkv, T, _ = k.shape
    n_rep = H // Hkv
    s_block = _pick_block(S, s_block, 8)
    t_block = _pick_block(T, t_block, 8)
    grid = (B, S // s_block, T // t_block)
    rows = n_rep * s_block

    def kv_index_map(b, si, ti):
        # Clamp fully-masked tiles onto the last needed tile so Pallas sees the
        # same block index and never issues a fresh DMA for skipped tiles.
        last = (si * s_block + (s_block - 1) + start_pos) // t_block
        return (b, 0, jnp.minimum(ti, last), 0)

    kern = functools.partial(
        _flash_attn_kernel, n_rep=n_rep, sm_scale=1.0 / math.sqrt(Dh),
        start_pos=start_pos, s_block=s_block, t_block=t_block)

    itemsize = q.dtype.itemsize
    n_s_tiles = S // s_block
    cost = pl.CostEstimate(
        flops=2 * B * H * S * T * Dh,            # ~causal half of QK^T + PV
        transcendentals=B * H * S * T // 2,      # exp (causal half)
        bytes_accessed=(q.size + (k.size + v.size) * n_s_tiles
                        + B * S * H * Dh) * itemsize,
    )
    return pl.pallas_call(
        kern,
        out_shape=jax.ShapeDtypeStruct((B, S, H * Dh), q.dtype),
        grid=grid,
        in_specs=[
            pl.BlockSpec((1, H, s_block, Dh), lambda b, si, ti: (b, 0, si, 0)),
            pl.BlockSpec((1, Hkv, t_block, Dh), kv_index_map),
            pl.BlockSpec((1, Hkv, t_block, Dh), kv_index_map),
        ],
        out_specs=pl.BlockSpec((1, s_block, H * Dh), lambda b, si, ti: (b, si, 0)),
        scratch_shapes=[
            pltpu.VMEM((Hkv, rows, Dh), jnp.bfloat16),   # staged, pre-scaled q
            pltpu.VMEM((Hkv, rows), jnp.float32),        # m (running max), lane-dense
            pltpu.VMEM((Hkv, rows), jnp.float32),        # l (running sum), lane-dense
            pltpu.VMEM((Hkv, rows, Dh), jnp.float32),    # acc
        ],
        compiler_params=pltpu.CompilerParams(
            dimension_semantics=("parallel", "parallel", "arbitrary"),
            vmem_limit_bytes=48 * 1024 * 1024),          # safe on v5e/v6e/v7x
        cost_estimate=cost,
    )(q, k, v)


# -----------------------------------------------------------------------------
# Glue (plain JAX): RoPE, KV-cache update
# -----------------------------------------------------------------------------
def apply_rotary_emb(xq, xk, cos, sin):
    # xq: (B,S,H,Dh), xk: (B,S,Hkv,Dh); cos/sin: (S, Dh//2)
    # TODO(synk): fuse RoPE into the attention q-tile load (pltpu.roll on XLU)
    # to avoid the extra HBM round trip of Q/K between QKV matmul and attention.
    def rot(x):
        xr = x.astype(jnp.float32).reshape(*x.shape[:-1], -1, 2)
        x_even, x_odd = xr[..., 0], xr[..., 1]
        c = cos[None, :, None, :]
        s = sin[None, :, None, :]
        o_even = x_even * c - x_odd * s
        o_odd = x_even * s + x_odd * c
        return jnp.stack([o_even, o_odd], axis=-1).reshape(x.shape).astype(x.dtype)

    return rot(xq), rot(xk)


def repeat_kv(x, n_rep):
    # Only used by the pure-JAX reference; the Pallas path never repeats KV.
    if n_rep == 1:
        return x
    b, t, h, d = x.shape
    return jnp.broadcast_to(x[:, :, :, None, :], (b, t, h, n_rep, d)).reshape(
        b, t, h * n_rep, d)


# -----------------------------------------------------------------------------
# Attention module (forward)
# -----------------------------------------------------------------------------
def attention_forward(params, cache_k, cache_v, x, start_pos, cos, sin,
                      n_heads, n_kv_heads, head_dim):
    # `start_pos` is a static Python int here (as in the reference module's
    # prefill/decode loop); the causal mask is generated inside the kernel.
    # TODO(synk): pass start_pos / total_len via scalar prefetch and run the KV
    # grid over the full cache so decode does not recompile per token.
    bsz, seqlen, dim = x.shape
    q_out = n_heads * head_dim
    kv_out = n_kv_heads * head_dim

    # Fused QKV projection: one tiled matmul, x read from HBM once.
    x2d = x.reshape(bsz * seqlen, dim)
    qkv = linear(x2d, params["wqkv"])                     # (M, q_out + 2*kv_out)
    xq = qkv[:, :q_out].reshape(bsz, seqlen, n_heads, head_dim)
    xk = qkv[:, q_out:q_out + kv_out].reshape(bsz, seqlen, n_kv_heads, head_dim)
    xv = qkv[:, q_out + kv_out:].reshape(bsz, seqlen, n_kv_heads, head_dim)

    xq, xk = apply_rotary_emb(xq, xk, cos, sin)

    # KV-cache update (functional)
    # TODO(synk): donate / alias the cache buffers (input_output_aliases or jit
    # donation) so this is an in-place write instead of a full-cache copy.
    cache_k = lax.dynamic_update_slice(cache_k, xk, (0, start_pos, 0, 0))
    cache_v = lax.dynamic_update_slice(cache_v, xv, (0, start_pos, 0, 0))

    total = start_pos + seqlen
    keys = cache_k[:bsz, :total]      # (B, T, Hkv, Dh)   -- NO repeat_kv
    values = cache_v[:bsz, :total]

    q = jnp.transpose(xq, (0, 2, 1, 3))       # (B, H,   S, Dh)
    k = jnp.transpose(keys, (0, 2, 1, 3))     # (B, Hkv, T, Dh)
    v = jnp.transpose(values, (0, 2, 1, 3))   # (B, Hkv, T, Dh)

    # Kernel writes a lane-dense (B, S, H*Dh) slab directly (no post-transpose).
    attn = flash_attention(q, k, v, start_pos=start_pos)

    out2d = linear(attn.reshape(bsz * seqlen, q_out), params["wo"])
    return out2d.reshape(bsz, seqlen, dim), cache_k, cache_v


# -----------------------------------------------------------------------------
# Pure-JAX reference (mirrors the PyTorch module) for a sanity check
# -----------------------------------------------------------------------------
def attention_reference(params, cache_k, cache_v, x, start_pos, cos, sin, mask,
                        n_heads, n_kv_heads, head_dim):
    bsz, seqlen, dim = x.shape
    n_rep = n_heads // n_kv_heads
    xq = (x @ params["wq"].T).reshape(bsz, seqlen, n_heads, head_dim)
    xk = (x @ params["wk"].T).reshape(bsz, seqlen, n_kv_heads, head_dim)
    xv = (x @ params["wv"].T).reshape(bsz, seqlen, n_kv_heads, head_dim)
    xq, xk = apply_rotary_emb(xq, xk, cos, sin)
    cache_k = lax.dynamic_update_slice(cache_k, xk, (0, start_pos, 0, 0))
    cache_v = lax.dynamic_update_slice(cache_v, xv, (0, start_pos, 0, 0))
    keys = repeat_kv(cache_k[:bsz, :start_pos + seqlen], n_rep)
    values = repeat_kv(cache_v[:bsz, :start_pos + seqlen], n_rep)
    q = jnp.transpose(xq, (0, 2, 1, 3))
    k = jnp.transpose(keys, (0, 2, 1, 3))
    v = jnp.transpose(values, (0, 2, 1, 3))
    scores = jnp.einsum("bhsd,bhtd->bhst", q, k) / math.sqrt(head_dim)
    scores = scores + mask[None, None]
    scores = jax.nn.softmax(scores.astype(jnp.float32), axis=-1)
    out = jnp.einsum("bhst,bhtd->bhsd", scores, v)
    out = jnp.transpose(out, (0, 2, 1, 3)).reshape(bsz, seqlen, -1)
    return out @ params["wo"].T


# -----------------------------------------------------------------------------
# Main
# -----------------------------------------------------------------------------
if __name__ == "__main__":
    # Small, self-consistent config (ModelArgs analogue)
    dim = 32
    n_heads = 4
    n_kv_heads = 2              # GQA: n_rep = 2
    head_dim = dim // n_heads   # 8
    max_batch_size = 4
    max_seq_len = 16

    bsz, seqlen, start_pos = 2, 8, 0

    key = jax.random.PRNGKey(0)
    kx, kq, kk, kv, ko = jax.random.split(key, 5)

    raw = {
        "wq": 0.05 * jax.random.normal(kq, (n_heads * head_dim, dim), jnp.float32),
        "wk": 0.05 * jax.random.normal(kk, (n_kv_heads * head_dim, dim), jnp.float32),
        "wv": 0.05 * jax.random.normal(kv, (n_kv_heads * head_dim, dim), jnp.float32),
        "wo": 0.05 * jax.random.normal(ko, (dim, n_heads * head_dim), jnp.float32),
    }
    # Fused QKV / output weights built once at parameter-prep time:
    # transposed to (in, out) and cast to bf16 so the MXU feed path is clean.
    params = {
        "wqkv": jnp.concatenate(
            [raw["wq"], raw["wk"], raw["wv"]], axis=0).T.astype(jnp.bfloat16),
        "wo": raw["wo"].T.astype(jnp.bfloat16),
    }

    x = jax.random.normal(kx, (bsz, seqlen, dim), jnp.float32)

    # KV caches (zeros, like the module __init__)
    cache_k = jnp.zeros((max_batch_size, max_seq_len, n_kv_heads, head_dim), jnp.float32)
    cache_v = jnp.zeros((max_batch_size, max_seq_len, n_kv_heads, head_dim), jnp.float32)

    # Precomputed rotary frequencies (cos/sin form of complex freqs_cis)
    theta = 10000.0
    freqs = 1.0 / (theta ** (jnp.arange(0, head_dim, 2, dtype=jnp.float32) / head_dim))
    t = jnp.arange(start_pos, start_pos + seqlen, dtype=jnp.float32)
    angles = jnp.outer(t, freqs)                 # (S, head_dim//2)
    cos, sin = jnp.cos(angles), jnp.sin(angles)

    out, new_ck, new_cv = attention_forward(
        params, cache_k, cache_v, x, start_pos, cos, sin,
        n_heads, n_kv_heads, head_dim,
    )
    out = jax.block_until_ready(out)

    # Reference uses the explicit causal prefill mask the Llama Transformer builds.
    total_len = start_pos + seqlen
    row = jnp.arange(seqlen)[:, None]
    col = jnp.arange(total_len)[None, :]
    mask = jnp.where(col > (row + start_pos), -jnp.inf, 0.0).astype(jnp.float32)

    ref = attention_reference(
        raw, cache_k, cache_v, x, start_pos, cos, sin, mask,
        n_heads, n_kv_heads, head_dim,
    )

    assert out.shape == (bsz, seqlen, dim)
    # Kernel uses bf16 MXU inputs (f32 accumulation) + approx reciprocal, so
    # compare against the full-f32 reference with a modest tolerance.
    assert jnp.allclose(out, ref, atol=2e-2, rtol=2e-2), "mismatch vs reference"

    # TODO(synk): ColumnParallelLinear/RowParallelLinear model-parallel sharding
    # (fs_init world size) is not modeled; single-device linears are used.
    print("KERNEL_OK")
</pallas_src>

<mosaic_0001>
module attributes {stable_mosaic.version = 11 : i64} {
  func.func @_matmul_kernel(%arg0: i32, %arg1: i32, %arg2: i32, %arg3: memref<16x32xf32, #tpu.memory_space<vmem>>, %arg4: memref<32x64xbf16, #tpu.memory_space<vmem>>, %arg5: memref<16x64xf32, #tpu.memory_space<vmem>>, %arg6: memref<16x64xf32, #tpu.memory_space<vmem>>) attributes {dimension_semantics = [#tpu.dimension_semantics<parallel>, #tpu.dimension_semantics<parallel>, #tpu.dimension_semantics<arbitrary>], iteration_bounds = array<i64: 1, 1, 1>, scalar_prefetch = 0 : i64, scratch_operands = 1 : i64, tpu.core_type = #tpu.core_type<tc>, window_params = [{transform_indices = @transform_0, window_bounds = array<i64: 16, 32>}, {transform_indices = @transform_1, window_bounds = array<i64: 32, 64>}, {transform_indices = @transform_2, window_bounds = array<i64: 16, 64>}]} {
    %c0_i32 = arith.constant 0 : i32
    %0 = arith.cmpi eq, %arg2, %c0_i32 : i32
    %1 = arith.extui %0 : i1 to i32
    %c0_i32_0 = arith.constant 0 : i32
    %2 = arith.cmpi ne, %1, %c0_i32_0 : i32
    scf.if %2 {
      %cst_10 = arith.constant 0.000000e+00 : f32
      %13 = vector.broadcast %cst_10 : f32 to vector<16x64xf32>
      %c0_11 = arith.constant 0 : index
      %c0_12 = arith.constant 0 : index
      %14 = vector.load %arg6[%c0_11, %c0_12] : memref<16x64xf32, #tpu.memory_space<vmem>>, vector<16x64xf32>
      tpu.vector_store %arg6[%c0_11, %c0_12], %13 {strides = array<i32>} : memref<16x64xf32, #tpu.memory_space<vmem>>, vector<16x64xf32>,
    } else {
    }
    %c0 = arith.constant 0 : index
    %c0_1 = arith.constant 0 : index
    %3 = vector.load %arg6[%c0, %c0_1] : memref<16x64xf32, #tpu.memory_space<vmem>>, vector<16x64xf32>
    %c0_2 = arith.constant 0 : index
    %c0_3 = arith.constant 0 : index
    %4 = vector.load %arg3[%c0_2, %c0_3] : memref<16x32xf32, #tpu.memory_space<vmem>>, vector<16x32xf32>
    %5 = arith.truncf %4 : vector<16x32xf32> to vector<16x32xbf16>
    %c0_4 = arith.constant 0 : index
    %c0_5 = arith.constant 0 : index
    %6 = vector.load %arg4[%c0_4, %c0_5] : memref<32x64xbf16, #tpu.memory_space<vmem>>, vector<32x64xbf16>
    %cst = arith.constant dense<0.000000e+00> : vector<16x64xf32>
    %7 = tpu.matmul %5, %6, %cst {dimension_numbers = #tpu.dot_dimension_numbers<[1], [0], [0], [1], [0, 0, 1, 1], [], []>} : vector<16x32xbf16>, vector<32x64xbf16>, vector<16x64xf32> -> vector<16x64xf32>
    %8 = arith.addf %3, %7 : vector<16x64xf32>
    %c0_6 = arith.constant 0 : index
    %c0_7 = arith.constant 0 : index
    %9 = vector.load %arg6[%c0_6, %c0_7] : memref<16x64xf32, #tpu.memory_space<vmem>>, vector<16x64xf32>
    tpu.vector_store %arg6[%c0_6, %c0_7], %8 {strides = array<i32>} : memref<16x64xf32, #tpu.memory_space<vmem>>, vector<16x64xf32>,
    %c0_i32_8 = arith.constant 0 : i32
    %10 = arith.cmpi eq, %arg2, %c0_i32_8 : i32
    %11 = arith.extui %10 : i1 to i32
    %c0_i32_9 = arith.constant 0 : i32
    %12 = arith.cmpi ne, %11, %c0_i32_9 : i32
    scf.if %12 {
      %c0_10 = arith.constant 0 : index
      %c0_11 = arith.constant 0 : index
      %13 = vector.load %arg6[%c0_10, %c0_11] : memref<16x64xf32, #tpu.memory_space<vmem>>, vector<16x64xf32>
      %c0_12 = arith.constant 0 : index
      %c0_13 = arith.constant 0 : index
      %14 = vector.load %arg5[%c0_12, %c0_13] : memref<16x64xf32, #tpu.memory_space<vmem>>, vector<16x64xf32>
      tpu.vector_store %arg5[%c0_12, %c0_13], %13 {strides = array<i32>} : memref<16x64xf32, #tpu.memory_space<vmem>>, vector<16x64xf32>,
    } else {
    }
    return
  }
  func.func @transform_0(%arg0: i32, %arg1: i32, %arg2: i32) -> (i32, i32) {
    %c0_i32 = arith.constant 0 : i32
    return %arg0, %arg2 : i32, i32
  }
  func.func @transform_1(%arg0: i32, %arg1: i32, %arg2: i32) -> (i32, i32) {
    %c0_i32 = arith.constant 0 : i32
    return %arg2, %arg1 : i32, i32
  }
  func.func @transform_2(%arg0: i32, %arg1: i32, %arg2: i32) -> (i32, i32) {
    %c0_i32 = arith.constant 0 : i32
    return %arg0, %arg1 : i32, i32
  }
}

</mosaic_0001>

<llo_original>
// kernel: tpu_custom_call.1
$region0: #{tpu_custom_call.1}
  #allocation0 [shape = 'u32[]', space=smem, size = 0x4, offset = 0x4, fixed_abs, tag = 'smem constant byte address 0x4 - core index']
  #allocation1 [shape = 'u32[144,128]{1,0:T(1,128)}', space=vmem, size = 0x12000, scoped, tag = 'internal scratch']
  #allocation2 [shape = 'f32[16,64]{1,0:T(8,128)}', space=vmem, size = 0x2000, scoped, tag = 'scratch operand']
  %s0 = inlined_call_operand.hbm [shape: f32[16,32], index: 0, kind: input, shape index: {}]
  %s1 = inlined_call_operand.hbm [shape: bf16[32,64], index: 1, kind: input, shape index: {}]
  %s2 = inlined_call_operand.hbm [shape: f32[16,64], index: 2, kind: output, shape index: {}]
  %s3 = sld [smem:[#allocation0]]
  $region34: #{tpu_custom_call.1} parent=0
    _
  %s5 = ssub.s32 1, %s3
  %s6 = scalar_select 0, %s5, %s3
  $region1: #{tpu_custom_call.1} parent=0
    #allocation3 [shape = 'u8[8192]{0}', space=vmem, size = 0x2000, scoped, tag = 'input window, operand 0, single buffered']
    #allocation4 [shape = 's32[1]{0}', space=sflag, size = 0x4, scoped, tag = 'scoped memory for tpu_custom_call.1']
    #allocation5 [shape = 's32[1]{0}', space=sflag, size = 0x4, scoped, tag = 'scoped memory for tpu_custom_call.1']
    #allocation6 [shape = 'u8[8192]{0}', space=vmem, size = 0x2000, scoped, tag = 'input window, operand 1, single buffered']
    #allocation7 [shape = 's32[1]{0}', space=sflag, size = 0x4, scoped, tag = 'scoped memory for tpu_custom_call.1']
    #allocation8 [shape = 'u8[8192]{0}', space=vmem, size = 0x2000, scoped, tag = 'output window, operand 0, single buffered']
    %7 = vsyncpa [#allocation4], 0
    %8 = vsyncpa [#allocation7], 0
    %9 = vsyncpa [#allocation5], 0
    // Predicated region
    $region2: #{tpu_custom_call.1} parent=1 // pred_check
      _
    $region3: #{tpu_custom_call.1} parent=1 // pred_check_branch
      %11 = sbr.rel (0) target = $region5
    $region4: #{tpu_custom_call.1} parent=1 // pred_region
      %s13 = ssub.s32 256, 256
      %14 = vsyncadd [#allocation4], %s13
      %s15 = sshll.u32 [#allocation3], 4
      %s16 = int_to_ptr.vmem [resolvable:$true] %s15
      %21 = dma.hbm_to_vmem [thread:$0]  %s0, 256, %s16, [#allocation4], 128, 128, 8
    $region5: #{tpu_custom_call.1} parent=1 // pred_fallthru
      _
    // Predicated region
    $region6: #{tpu_custom_call.1} parent=1 // pred_check
      _
    $region7: #{tpu_custom_call.1} parent=1 // pred_check_branch
      %23 = sbr.rel (0) target = $region9
    $region8: #{tpu_custom_call.1} parent=1 // pred_region
      %s25 = ssub.s32 256, 256
      %26 = vsyncadd [#allocation7], %s25
      %s27 = sshll.u32 [#allocation6], 4
      %s28 = int_to_ptr.vmem [resolvable:$true] %s27
      %33 = dma.hbm_to_vmem [thread:$0]  %s1, 256, %s28, [#allocation7], 64, 64, 4
    $region9: #{tpu_custom_call.1} parent=1 // pred_fallthru
      _
    // Predicated region
    $region10: #{tpu_custom_call.1} parent=1 // pred_check
      _
    $region11: #{tpu_custom_call.1} parent=1 // pred_check_branch
      %35 = sbr.rel (0) target = $region13
    $region12: #{tpu_custom_call.1} parent=1 // pred_region
      %36 = dma.done [#allocation4], 256
    $region13: #{tpu_custom_call.1} parent=1 // pred_fallthru
      _
    // Predicated region
    $region14: #{tpu_custom_call.1} parent=1 // pred_check
      _
    $region15: #{tpu_custom_call.1} parent=1 // pred_check_branch
      %38 = sbr.rel (0) target = $region17
    $region16: #{tpu_custom_call.1} parent=1 // pred_region
      %39 = dma.done [#allocation7], 256
    $region17: #{tpu_custom_call.1} parent=1 // pred_fallthru
      _
    %p41 = scmp.eq.s32.totalorder 0, 0
    // Predicated region
    $region18: #{tpu_custom_call.1} parent=1 // pred_check
      %p42 = pneg %p41
    $region19: #{tpu_custom_call.1} parent=1 // pred_check_branch
      %44 = sbr.rel (%p42) target = $region21
    $region20: #{tpu_custom_call.1} parent=1 // pred_region
      %vm45 = vcmask 523264
      %46 = vst.msk [vmem:[#allocation2] sm:$0xff] %vm45, 0.0
      %47 = vst.msk [vmem:[#allocation2 + $0x8] sm:$0xff] %vm45, 0.0
    $region21: #{tpu_custom_call.1} parent=1 // pred_fallthru
      _
    %v48 = vld [vmem:[#allocation2] sm:$0xff]
    %v49 = vld [vmem:[#allocation2 + $0x8] sm:$0xff]
    %v50 = vld [vmem:[#allocation3] sm:$0xff]
    %v51 = vld [vmem:[#allocation3 + $0x8] sm:$0xff]
    %v52 = vpack.c.bf16 %v51, %v50
    %v53 = vld [vmem:[#allocation6] sm:$0xf]
    %v54 = vld [vmem:[#allocation6 + $0x4] sm:$0xf]
    %v55 = vld [vmem:[#allocation6 + $0x8] sm:$0xf]
    %v56 = vld [vmem:[#allocation6 + $0xc] sm:$0xf]
    %v61 = vunpack.c.l.b16 %v53
    %v62 = vunpack.c.l.b16 %v54
    %v63 = vunpack.c.l.b16 %v55
    %v64 = vunpack.c.l.b16 %v56
    %v65 = vpack.c.b16 %v62, %v61
    %v66 = vpack.c.b16 %v64, %v63
    %vm69 = vcmask 261120
    %v71 = vsel %vm69, %v52, 0
    %73 = vmatprep.subr.bf16.mxu0 0
    %74 = vmatpush1.bf16.msra.mxu0 %v65
    %75 = vmatprep.subr.bf16.mxu0 0
    %76 = vmatpush1.bf16.msra.mxu0 %v66
    %77 = vmatprep.subr.bf16.mxu0 0
    %78 = vmatpush1.bf16.msra.mxu0 0
    %79 = vmatprep.subr.bf16.mxu0 0
    %80 = vmatpush1.bf16.msra.mxu0 0
    %81 = vmatprep.subr.bf16.mxu0 0
    %82 = vmatpush1.bf16.msra.mxu0 0
    %83 = vmatprep.subr.bf16.mxu0 0
    %84 = vmatpush1.bf16.msra.mxu0 0
    %85 = vmatprep.subr.bf16.mxu0 0
    %86 = vmatpush1.bf16.msra.mxu0 0
    %87 = vmatprep.subr.bf16.mxu0 0
    %88 = vmatpush1.bf16.msra.mxu0 0
    %89 = vmatprep.subr.bf16.mxu0 0
    %90 = vmatpush1.bf16.msra.mxu0 0
    %91 = vmatprep.subr.bf16.mxu0 0
    %92 = vmatpush1.bf16.msra.mxu0 0
    %93 = vmatprep.subr.bf16.mxu0 0
    %94 = vmatpush1.bf16.msra.mxu0 0
    %95 = vmatprep.subr.bf16.mxu0 0
    %96 = vmatpush1.bf16.msra.mxu0 0
    %97 = vmatprep.subr.bf16.mxu0 0
    %98 = vmatpush1.bf16.msra.mxu0 0
    %99 = vmatprep.subr.bf16.mxu0 0
    %100 = vmatpush1.bf16.msra.mxu0 0
    %101 = vmatprep.subr.bf16.mxu0 0
    %102 = vmatpush1.bf16.msra.mxu0 0
    %103 = vmatprep.subr.bf16.mxu0 0
    %104 = vmatpush1.bf16.msra.mxu0 0
    %105 = vmatprep.mubr.bf16.mxu0 0
    %106 = vmatmul.mubr.bf16.gmra.mrb[0].mxu0 %v71
    %v107 = vpop.f32.mrb[0].mxu0
    %v108 = vadd.f32 0.0, %v107
    %v109 = vpop.f32.mrb[0].mxu0
    %v110 = vpop.f32.mrb[0].mxu0
    %v111 = vadd.f32 0.0, %v110
    %v112 = vpop.f32.mrb[0].mxu0
    %113 = vdwg.mxu0
    %v114 = vadd.f32 %v48, %v108
    %v115 = vadd.f32 %v49, %v111
    %vm116 = vcmask 523264
    %117 = vst.msk [vmem:[#allocation2] sm:$0xff] %vm116, %v114
    %118 = vst.msk [vmem:[#allocation2 + $0x8] sm:$0xff] %vm116, %v115
    // Predicated region
    $region22: #{tpu_custom_call.1} parent=1 // pred_check
      %p119 = pneg %p41
    $region23: #{tpu_custom_call.1} parent=1 // pred_check_branch
      %121 = sbr.rel (%p119) target = $region25
    $region24: #{tpu_custom_call.1} parent=1 // pred_region
      %v122 = vld [vmem:[#allocation2] sm:$0xff]
      %v123 = vld [vmem:[#allocation2 + $0x8] sm:$0xff]
      %124 = vst.msk [vmem:[#allocation8] sm:$0xff] %vm116, %v122
      %125 = vst.msk [vmem:[#allocation8 + $0x8] sm:$0xff] %vm116, %v123
    $region25: #{tpu_custom_call.1} parent=1 // pred_fallthru
      _
    // Predicated region
    $region26: #{tpu_custom_call.1} parent=1 // pred_check
      _
    $region27: #{tpu_custom_call.1} parent=1 // pred_check_branch
      %127 = sbr.rel (0) target = $region29
    $region28: #{tpu_custom_call.1} parent=1 // pred_region
      %s129 = ssub.s32 256, 256
      %130 = vsyncadd [#allocation5], %s129
      %s131 = sshll.u32 [#allocation8], 4
      %s132 = int_to_ptr.vmem [resolvable:$true] %s131
      %137 = dma.vmem_to_hbm [thread:$0]  %s132, 256, %s2, [#allocation5], 128, 128, 8
    $region29: #{tpu_custom_call.1} parent=1 // pred_fallthru
      _
    // Predicated region
    $region30: #{tpu_custom_call.1} parent=1 // pred_check
      _
    $region31: #{tpu_custom_call.1} parent=1 // pred_check_branch
      %139 = sbr.rel (0) target = $region33
    $region32: #{tpu_custom_call.1} parent=1 // pred_region
      %140 = dma.done [#allocation5], 256
    $region33: #{tpu_custom_call.1} parent=1 // pred_fallthru
      _
    %141 = vsyncpa [#allocation4], 1
    %142 = vsyncpa [#allocation7], 1
    %143 = vsyncpa [#allocation5], 1

</llo_original>
